<compile_context>
chip_gen: v6e
topology: v6e:2x2x1
jax: 0.10.0
libtpu: 0.0.40
codegen_flags: <defaults>
</compile_context>

<pallas_src>
import functools

import jax
import jax.numpy as jnp
from jax.experimental import pallas as pl
from jax.experimental.pallas import tpu as pltpu


def _round_up(x, m):
    return ((x + m - 1) // m) * m


def _cdiv(a, b):
    return (a + b - 1) // b


def _static_int(v):
    """Return int(v) if v is a trace-time constant, else None."""
    if isinstance(v, jax.core.Tracer):
        return None
    try:
        return int(v)
    except Exception:
        return None


def _static_window_kernel(alpha_ref, beta_ref, x_ref, o_ref, *, lo, hi, col_tile_off):
    """Biased-window kernel with static [lo, hi) baked in (constant compares)."""
    tc = x_ref.shape[-1]
    col = (jax.lax.broadcasted_iota(jnp.int32, (1, tc), 1)
           + (pl.program_id(1) + col_tile_off) * tc)
    in_range = (col >= lo) & (col < hi)
    xf = x_ref[...].astype(jnp.float32)
    biased = alpha_ref[0] * xf + beta_ref[0]
    o_ref[...] = jnp.where(in_range, biased, xf).astype(o_ref.dtype)


def _dynamic_window_kernel(lo_ref, hi_ref, alpha_ref, beta_ref, x_ref, o_ref):
    """Fallback kernel when low/high are traced values: full-grid pass."""
    tc = x_ref.shape[-1]
    col = (jax.lax.broadcasted_iota(jnp.int32, (1, tc), 1)
           + pl.program_id(1) * tc)
    in_range = (col >= lo_ref[0]) & (col < hi_ref[0])
    xf = x_ref[...].astype(jnp.float32)
    biased = alpha_ref[0] * xf + beta_ref[0]
    o_ref[...] = jnp.where(in_range, biased, xf).astype(o_ref.dtype)


def bias_layer(x, low_range, high_range, alpha, beta):
    """Pallas implementation of BiasLayer.forward.

    x:          (B, C) array of logits
    low_range:  start of biased slice (Python int preferred; traced ok)
    high_range: end (exclusive) of biased slice
    alpha:      (1,) float param
    beta:       (1,) float param
    """
    B, C = x.shape
    dtype = x.dtype
    itemsize = jnp.dtype(dtype).itemsize

    # Dtype-aware sublane packing: 8 rows f32, 16 bf16/f16, 32 int8/fp8.
    sub = max(8, 32 // itemsize)

    alpha = jnp.asarray(alpha, dtype=jnp.float32).reshape((1,))
    beta = jnp.asarray(beta, dtype=jnp.float32).reshape((1,))

    # Tile caps: <= 512 x 2048 f32 = 4 MiB/tile; 4 live tiles (double-buffered
    # in + out) = 16 MiB < 32 MiB scoped VMEM on all generations (v7x has only
    # 64 MiB physical, so we deliberately do NOT raise the limit further).
    TB = min(512, _round_up(B, sub))
    TC = min(2048, _round_up(C, 128))
    vmem_limit = 32 * 1024 * 1024

    lo_s = _static_int(low_range)
    hi_s = _static_int(high_range)

    if lo_s is not None and hi_s is not None:
        # ---- Static bounds: aliased, windowed path (only touch [lo, hi)). ----
        lo = max(0, min(lo_s, C))
        hi = max(0, min(hi_s, C))
        if hi <= lo:
            # Empty slice: clone() is a value-level no-op.
            return x
        win = hi - lo
        # Tighten the column tile so the visited tiles wrap the window (keeps
        # HBM traffic ~ 2*B*win bytes); still lane-dense (multiple of 128).
        TC = min(TC, max(128, _round_up(win, 128)))

        n_row = _cdiv(B, TB)
        n_col = _cdiv(hi, TC) - (lo // TC)
        # v7x has 2 TensorCores: ensure >= 2 programs when shapes allow it.
        if n_row * n_col < 2:
            if B > sub:
                TB = max(sub, _round_up(_cdiv(B, 2), sub))
            elif TC > 128 and win > 128:
                TC = max(128, _round_up(_cdiv(win, 2), 128))
            n_row = _cdiv(B, TB)
            n_col = _cdiv(hi, TC) - (lo // TC)

        j0 = lo // TC  # first column-tile index overlapping the window
        kernel = functools.partial(
            _static_window_kernel, lo=lo, hi=hi, col_tile_off=j0)

        touched_cols = min(C, n_col * TC)
        cost = pl.CostEstimate(
            flops=2 * B * touched_cols,
            transcendentals=0,
            bytes_accessed=2 * B * touched_cols * itemsize,
        )

        out = pl.pallas_call(
            kernel,
            out_shape=jax.ShapeDtypeStruct((B, C), dtype),
            grid=(n_row, n_col),
            in_specs=[
                pl.BlockSpec(memory_space=pltpu.MemorySpace.SMEM),  # alpha
                pl.BlockSpec(memory_space=pltpu.MemorySpace.SMEM),  # beta
                pl.BlockSpec((TB, TC), lambda i, j: (i, j + j0)),   # x window tile
            ],
            out_specs=pl.BlockSpec((TB, TC), lambda i, j: (i, j + j0)),
            # Output aliases x: column tiles outside the window are never
            # visited and keep x's values (clone semantics) with zero traffic.
            input_output_aliases={2: 0},
            compiler_params=pltpu.CompilerParams(
                dimension_semantics=("parallel", "parallel"),
                vmem_limit_bytes=vmem_limit,
            ),
            cost_estimate=cost,
        )(alpha, beta, x)
        return out

    # ---- Dynamic (traced) bounds: full grid, no padding, no aliasing. ----
    lo = jnp.asarray(low_range, dtype=jnp.int32).reshape((1,))
    hi = jnp.asarray(high_range, dtype=jnp.int32).reshape((1,))

    n_row = _cdiv(B, TB)
    n_col = _cdiv(C, TC)
    if n_row * n_col < 2:
        if B > sub:
            TB = max(sub, _round_up(_cdiv(B, 2), sub))
        elif C > 128:
            TC = max(128, _round_up(_cdiv(C, 2), 128))
        n_row = _cdiv(B, TB)
        n_col = _cdiv(C, TC)

    cost = pl.CostEstimate(
        flops=2 * B * C,
        transcendentals=0,
        bytes_accessed=2 * B * C * itemsize,
    )

    out = pl.pallas_call(
        _dynamic_window_kernel,
        out_shape=jax.ShapeDtypeStruct((B, C), dtype),
        grid=(n_row, n_col),
        in_specs=[
            pl.BlockSpec(memory_space=pltpu.MemorySpace.SMEM),  # low
            pl.BlockSpec(memory_space=pltpu.MemorySpace.SMEM),  # high
            pl.BlockSpec(memory_space=pltpu.MemorySpace.SMEM),  # alpha
            pl.BlockSpec(memory_space=pltpu.MemorySpace.SMEM),  # beta
            pl.BlockSpec((TB, TC), lambda i, j: (i, j)),        # x tile
        ],
        out_specs=pl.BlockSpec((TB, TC), lambda i, j: (i, j)),
        compiler_params=pltpu.CompilerParams(
            dimension_semantics=("parallel", "parallel"),
            vmem_limit_bytes=vmem_limit,
        ),
        cost_estimate=cost,
    )(lo, hi, alpha, beta, x)
    return out


if __name__ == "__main__":
    key = jax.random.PRNGKey(0)

    # Small shapes consistent with the module: logits over a few classes.
    B, C = 2, 32
    low_range, high_range = 8, 24

    x = jax.random.normal(key, (B, C), dtype=jnp.float32)

    # nn.Parameter(torch.ones(1)) / nn.Parameter(torch.zeros(1)), perturbed so
    # the op is non-trivial.
    alpha = jnp.ones((1,), dtype=jnp.float32) * 1.5
    beta = jnp.zeros((1,), dtype=jnp.float32) + 0.25

    out = jax.block_until_ready(bias_layer(x, low_range, high_range, alpha, beta))

    ref = x.at[:, low_range:high_range].set(
        alpha[0] * x[:, low_range:high_range] + beta[0]
    )
    assert jnp.allclose(out, ref, atol=1e-6, rtol=1e-6), "mismatch (static path)"

    # Larger, non-aligned shape exercising the unpadded / ragged-edge path.
    B2, C2 = 37, 300
    lo2, hi2 = 100, 260
    x2 = jax.random.normal(jax.random.PRNGKey(1), (B2, C2), dtype=jnp.float32)
    out2 = jax.block_until_ready(bias_layer(x2, lo2, hi2, alpha, beta))
    ref2 = x2.at[:, lo2:hi2].set(alpha[0] * x2[:, lo2:hi2] + beta[0])
    assert jnp.allclose(out2, ref2, atol=1e-6, rtol=1e-6), "mismatch (window path)"

    # Dynamic (traced) bounds: exercises the full-grid fallback path.
    lo3 = jnp.asarray(8, dtype=jnp.int32)
    hi3 = jnp.asarray(24, dtype=jnp.int32)
    out3 = jax.block_until_ready(bias_layer(x, lo3, hi3, alpha, beta))
    assert jnp.allclose(out3, ref, atol=1e-6, rtol=1e-6), "mismatch (dynamic path)"

    print("KERNEL_OK")
</pallas_src>

<mosaic_0001>
module attributes {stable_mosaic.version = 11 : i64} {
  func.func @_static_window_kernel(%arg0: i32, %arg1: i32, %arg2: memref<1xf32, #tpu.memory_space<smem>>, %arg3: memref<1xf32, #tpu.memory_space<smem>>, %arg4: memref<8x128xf32, #tpu.memory_space<vmem>>, %arg5: memref<8x128xf32, #tpu.memory_space<vmem>>) attributes {dimension_semantics = [#tpu.dimension_semantics<parallel>, #tpu.dimension_semantics<parallel>], iteration_bounds = array<i64: 1, 1>, scalar_prefetch = 0 : i64, scratch_operands = 0 : i64, tpu.core_type = #tpu.core_type<tc>, window_params = [{transform_indices = @transform_0, window_bounds = array<i64: 1>}, {transform_indices = @transform_1, window_bounds = array<i64: 1>}, {transform_indices = @transform_2, window_bounds = array<i64: 8, 128>}, {transform_indices = @transform_3, window_bounds = array<i64: 8, 128>}]} {
    %0 = tpu.iota {dimensions = array<i32: 1>} : vector<1x128xi32>
    %c0_i32 = arith.constant 0 : i32
    %1 = arith.addi %arg1, %c0_i32 : i32
    %c128_i32 = arith.constant 128 : i32
    %2 = arith.muli %1, %c128_i32 : i32
    %3 = vector.broadcast %2 : i32 to vector<1x128xi32>
    %4 = arith.addi %0, %3 : vector<1x128xi32>
    %c8_i32 = arith.constant 8 : i32
    %5 = vector.broadcast %c8_i32 : i32 to vector<1x128xi32>
    %6 = arith.cmpi sge, %4, %5 : vector<1x128xi32>
    %c24_i32 = arith.constant 24 : i32
    %7 = vector.broadcast %c24_i32 : i32 to vector<1x128xi32>
    %8 = arith.cmpi slt, %4, %7 : vector<1x128xi32>
    %9 = arith.andi %6, %8 : vector<1x128xi1>
    %c0 = arith.constant 0 : index
    %c0_0 = arith.constant 0 : index
    %10 = vector.load %arg4[%c0, %c0_0] : memref<8x128xf32, #tpu.memory_space<vmem>>, vector<8x128xf32>
    %c0_1 = arith.constant 0 : index
    %11 = memref.load %arg2[%c0_1] : memref<1xf32, #tpu.memory_space<smem>>
    %12 = vector.broadcast %11 : f32 to vector<8x128xf32>
    %13 = arith.mulf %12, %10 : vector<8x128xf32>
    %c0_2 = arith.constant 0 : index
    %14 = memref.load %arg3[%c0_2] : memref<1xf32, #tpu.memory_space<smem>>
    %15 = vector.broadcast %14 : f32 to vector<8x128xf32>
    %16 = arith.addf %13, %15 : vector<8x128xf32>
    %17 = vector.shape_cast %9 : vector<1x128xi1> to vector<1x128xi1>
    %18 = vector.broadcast %17 : vector<1x128xi1> to vector<8x128xi1>
    %19 = arith.select %18, %16, %10 : vector<8x128xi1>, vector<8x128xf32>
    %c0_3 = arith.constant 0 : index
    %c0_4 = arith.constant 0 : index
    %20 = vector.load %arg5[%c0_3, %c0_4] : memref<8x128xf32, #tpu.memory_space<vmem>>, vector<8x128xf32>
    tpu.vector_store %arg5[%c0_3, %c0_4], %19 {strides = array<i32>} : memref<8x128xf32, #tpu.memory_space<vmem>>, vector<8x128xf32>,
    return
  }
  func.func @transform_0(%arg0: i32, %arg1: i32) -> i32 {
    %c0_i32 = arith.constant 0 : i32
    %c0_i32_0 = arith.constant 0 : i32
    return %c0_i32 : i32
  }
  func.func @transform_1(%arg0: i32, %arg1: i32) -> i32 {
    %c0_i32 = arith.constant 0 : i32
    %c0_i32_0 = arith.constant 0 : i32
    return %c0_i32 : i32
  }
  func.func @transform_2(%arg0: i32, %arg1: i32) -> (i32, i32) {
    %c0_i32 = arith.constant 0 : i32
    %0 = arith.addi %arg1, %c0_i32 : i32
    %c0_i32_0 = arith.constant 0 : i32
    return %arg0, %0 : i32, i32
  }
  func.func @transform_3(%arg0: i32, %arg1: i32) -> (i32, i32) {
    %c0_i32 = arith.constant 0 : i32
    %0 = arith.addi %arg1, %c0_i32 : i32
    %c0_i32_0 = arith.constant 0 : i32
    return %arg0, %0 : i32, i32
  }
}

</mosaic_0001>

<llo_original>
// kernel: tpu_custom_call.1
$region0: #{tpu_custom_call.1}
  #allocation0 [shape = 'u32[]', space=smem, size = 0x4, offset = 0x4, fixed_abs, tag = 'smem constant byte address 0x4 - core index']
  #allocation1 [shape = 'u32[144,128]{1,0:T(1,128)}', space=vmem, size = 0x12000, scoped, tag = 'internal scratch']
  #allocation2 [shape = 'f32[1]{0:T(128)S(6)}', space=smem, size = 0x200, scoped, tag = 'scoped memory for tpu_custom_call.1']
  #allocation3 [shape = 'f32[1]{0:T(128)S(6)}', space=smem, size = 0x200, scoped, tag = 'scoped memory for tpu_custom_call.1']
  %s0 = inlined_call_operand.<no memory space> [shape: f32[1], index: 0, kind: input, shape index: {}]
  %s1 = inlined_call_operand.<no memory space> [shape: f32[1], index: 1, kind: input, shape index: {}]
  %s2 = inlined_call_operand.hbm [shape: f32[2,32], index: 2, kind: input, shape index: {}, may-alias: {2,3}]
  %s3 = inlined_call_operand.hbm [shape: f32[2,32], index: 3, kind: output, shape index: {}, may-alias: {2,3}]
  %s4 = sld [smem:[#allocation0]]
  $region26: #{tpu_custom_call.1} parent=0
    _
  %s6 = ssub.s32 1, %s4
  %s7 = scalar_select 0, %s6, %s4
  %8 = sst [smem:[#allocation2]] %s0
  %9 = sst [smem:[#allocation3]] %s1
  $region1: #{tpu_custom_call.1} parent=0
    #allocation4 [shape = 'u8[4096]{0}', space=vmem, size = 0x1000, scoped, tag = 'input window, operand 2, single buffered']
    #allocation5 [shape = 's32[1]{0}', space=sflag, size = 0x4, scoped, tag = 'scoped memory for tpu_custom_call.1']
    #allocation6 [shape = 's32[1]{0}', space=sflag, size = 0x4, scoped, tag = 'scoped memory for tpu_custom_call.1']
    #allocation7 [shape = 'u8[4096]{0}', space=vmem, size = 0x1000, scoped, tag = 'output window, operand 0, single buffered']
    %10 = vsyncpa [#allocation5], 0
    %11 = vsyncpa [#allocation6], 0
    // Predicated region
    $region2: #{tpu_custom_call.1} parent=1 // pred_check
      _
    $region3: #{tpu_custom_call.1} parent=1 // pred_check_branch
      %13 = sbr.rel (0) target = $region5
    $region4: #{tpu_custom_call.1} parent=1 // pred_region
      _
    $region5: #{tpu_custom_call.1} parent=1 // pred_fallthru
      _
    // Predicated region
    $region6: #{tpu_custom_call.1} parent=1 // pred_check
      _
    $region7: #{tpu_custom_call.1} parent=1 // pred_check_branch
      %15 = sbr.rel (0) target = $region9
    $region8: #{tpu_custom_call.1} parent=1 // pred_region
      _
    $region9: #{tpu_custom_call.1} parent=1 // pred_fallthru
      _
    // Predicated region
    $region10: #{tpu_custom_call.1} parent=1 // pred_check
      _
    $region11: #{tpu_custom_call.1} parent=1 // pred_check_branch
      %17 = sbr.rel (0) target = $region13
    $region12: #{tpu_custom_call.1} parent=1 // pred_region
      %s19 = ssub.s32 128, 32
      %20 = vsyncadd [#allocation5], %s19
      %s21 = sshll.u32 [#allocation4], 4
      %s22 = int_to_ptr.vmem [resolvable:$true] %s21
      %27 = dma.hbm_to_vmem [thread:$0]  %s2, 32, %s22, [#allocation5], 32, 32, 2
    $region13: #{tpu_custom_call.1} parent=1 // pred_fallthru
      _
    // Predicated region
    $region14: #{tpu_custom_call.1} parent=1 // pred_check
      _
    $region15: #{tpu_custom_call.1} parent=1 // pred_check_branch
      %29 = sbr.rel (0) target = $region17
    $region16: #{tpu_custom_call.1} parent=1 // pred_region
      %30 = dma.done [#allocation5], 128
    $region17: #{tpu_custom_call.1} parent=1 // pred_fallthru
      _
    %v31 = vlaneseq
    %v32 = vand.u32 %v31, 127
    %s33 = smul.u32 0, 128
    %v34 = vstv %s33
    %v35 = vadd.s32 %v32, %v34
    %vm36 = vcmp.ge.s32.totalorder %v35, 8
    %vm37 = vcmp.lt.s32.totalorder %v35, 24
    %vm38 = vmand %vm36, %vm37
    %v39 = vld [vmem:[#allocation4] sm:$0xff]
    %s40 = sld [smem:[#allocation2]]
    %v41 = vstv %s40
    %v42 = vmul.f32 %v41, %v39
    %s43 = sld [smem:[#allocation3]]
    %v44 = vstv %s43
    %v45 = vadd.f32 %v42, %v44
    %v46 = vsel %vm38, 1, 0
    %vm47 = vcmp.eq.s32.totalorder %v46, 1
    %v48 = vsel %vm47, %v45, %v39
    %49 = vst [vmem:[#allocation7] sm:$0xff] %v48
    // Predicated region
    $region18: #{tpu_custom_call.1} parent=1 // pred_check
      _
    $region19: #{tpu_custom_call.1} parent=1 // pred_check_branch
      %51 = sbr.rel (0) target = $region21
    $region20: #{tpu_custom_call.1} parent=1 // pred_region
      %s53 = ssub.s32 128, 32
      %54 = vsyncadd [#allocation6], %s53
      %s55 = sshll.u32 [#allocation7], 4
      %s56 = int_to_ptr.vmem [resolvable:$true] %s55
      %61 = dma.vmem_to_hbm [thread:$0]  %s56, 32, %s3, [#allocation6], 32, 32, 2
    $region21: #{tpu_custom_call.1} parent=1 // pred_fallthru
      _
    // Predicated region
    $region22: #{tpu_custom_call.1} parent=1 // pred_check
      _
    $region23: #{tpu_custom_call.1} parent=1 // pred_check_branch
      %63 = sbr.rel (0) target = $region25
    $region24: #{tpu_custom_call.1} parent=1 // pred_region
      %64 = dma.done [#allocation6], 128
    $region25: #{tpu_custom_call.1} parent=1 // pred_fallthru
      _
    %65 = vsyncpa [#allocation5], 1
    %66 = vsyncpa [#allocation6], 1

</llo_original>
